<compile_context>
chip_gen: v5e
topology: v5e:2x2
jax: 0.10.0
libtpu: 0.0.40
codegen_flags: <defaults>
</compile_context>

<pallas_src>
import math

import jax
import jax.numpy as jnp
from jax.experimental import pallas as pl
from jax.experimental.pallas import tpu as pltpu

_LANE = 128


def _sublane_multiple(dtype) -> int:
    """Sublane tiling multiple for a dtype (8 for f32, 16 for bf16, ...)."""
    return max(8, 32 // jnp.dtype(dtype).itemsize)


def _padded_bytes(rows: int, cols: int, dtype) -> int:
    """Resident VMEM bytes of a (rows, cols) tile after (sublane, lane) padding."""
    sub = _sublane_multiple(dtype)
    r = -(-rows // sub) * sub
    c = -(-cols // _LANE) * _LANE
    return r * c * jnp.dtype(dtype).itemsize


def _vmem_capacity_bytes() -> int:
    """Physical VMEM per TensorCore; conservative fallback if the query fails."""
    try:
        cap = int(pltpu.get_tpu_info().vmem_capacity_bytes)
        if cap > 0:
            return cap
    except Exception:
        pass
    return 64 * 1024 * 1024  # v7x per-TC size: safe everywhere


def _interp_matrix(in_size: int, out_size: int, mode: str) -> jnp.ndarray:
    """(out_size, in_size) 1-D interpolation matrix matching PyTorch
    F.interpolate semantics (align_corners=False for bilinear)."""
    o = jnp.arange(out_size, dtype=jnp.float32)
    if mode == "nearest":
        idx = jnp.floor(o * (in_size / out_size)).astype(jnp.int32)
        idx = jnp.clip(idx, 0, in_size - 1)
        return jax.nn.one_hot(idx, in_size, dtype=jnp.float32)
    if mode == "bilinear":
        src = (o + 0.5) * (in_size / out_size) - 0.5
        src = jnp.maximum(src, 0.0)
        i0 = jnp.clip(jnp.floor(src).astype(jnp.int32), 0, in_size - 1)
        i1 = jnp.minimum(i0 + 1, in_size - 1)
        w1 = src - i0.astype(jnp.float32)
        w0 = 1.0 - w1
        m = jnp.zeros((out_size, in_size), dtype=jnp.float32)
        rows = o.astype(jnp.int32)
        m = m.at[rows, i0].add(w0)
        m = m.at[rows, i1].add(w1)
        return m
    raise ValueError(f"unsupported mode: {mode}")


def _choose_channel_block(nc, legal_fn, footprint_fn, budget_bytes, min_steps):
    """Largest divisor of nc whose padded VMEM footprint fits `budget_bytes`,
    preferring a grid of >= min_steps steps (pipelining / 2-TC split)."""
    divisors = [d for d in range(1, nc + 1) if nc % d == 0]
    legal = [d for d in divisors if legal_fn(d)]
    if not legal:
        legal = [nc]  # full-array block always satisfies the tiling rule
    fitting = [d for d in legal if footprint_fn(d) <= budget_bytes]
    if not fitting:
        return min(legal)
    preferred = [d for d in fitting if nc // d >= min_steps]
    return max(preferred) if preferred else max(fitting)


def _make_interp_kernel(cb: int, h: int, ho: int, compute_dtype, unroll):
    h_aligned = (h % 8) == 0
    ho_aligned = (ho % 8) == 0

    def kernel(x_ref, wh_ref, wwt_ref, o_ref, tmp_ref):
        # x_ref:   (cb*H, W)    input slab (cb channels stacked along rows)
        # wh_ref:  (Ho, H)      row-interp matrix      (compute dtype)
        # wwt_ref: (W, Wo)      col-interp matrix^T    (compute dtype)
        # o_ref:   (cb*Ho, Wo)  output slab
        # tmp_ref: (cb*Ho, W)   row-interp intermediate (compute dtype)
        wh = wh_ref[...]

        def body(c, carry):
            r_in = c * h
            r_out = c * ho
            if h_aligned:
                r_in = pl.multiple_of(r_in, 8)
            if ho_aligned:
                r_out = pl.multiple_of(r_out, 8)
            x = x_ref[pl.ds(r_in, h), :].astype(compute_dtype)
            tmp_ref[pl.ds(r_out, ho), :] = jnp.dot(
                wh, x, preferred_element_type=jnp.float32
            ).astype(tmp_ref.dtype)
            return carry

        jax.lax.fori_loop(0, cb, body, 0, unroll=unroll)

        # One large-M column-interp matmul over the whole channel slab and a
        # single dense full-slab store (lane-dense when Wo % 128 == 0).
        o_ref[...] = jnp.dot(
            tmp_ref[...], wwt_ref[...], preferred_element_type=jnp.float32
        ).astype(o_ref.dtype)

    return kernel


class Interpolate:
    """Pallas equivalent of the PyTorch Interpolate / bilinear-deconv upsample."""

    # Cap on the output-row extent of one slab: bounds Mosaic code size for the
    # single big matmul while still keeping the MXU M-dimension >> 256.
    _MAX_SLAB_ROWS = 8192

    def __init__(self, scale, mode, out_dtype=None):
        self.scale = scale
        self.mode = mode
        self.out_dtype = out_dtype  # e.g. jnp.bfloat16 to halve HBM writeback

    def __call__(self, x):
        N, C, H, W = x.shape
        Ho = int(math.floor(H * self.scale))
        Wo = int(math.floor(W * self.scale))
        out_dtype = jnp.dtype(self.out_dtype) if self.out_dtype is not None else x.dtype

        # bf16 operands (full MXU rate) when the input is bf16; f32 otherwise.
        compute_dtype = jnp.bfloat16 if x.dtype == jnp.bfloat16 else jnp.float32

        wh = _interp_matrix(H, Ho, self.mode).astype(compute_dtype)     # (Ho, H)
        wwt = _interp_matrix(W, Wo, self.mode).T.astype(compute_dtype)  # (W, Wo)

        nc = N * C
        x_flat = x.reshape(nc * H, W)

        # ---- generation-aware VMEM plan with tile-padding-aware accounting ----
        capacity = _vmem_capacity_bytes()
        if capacity < 100 * 1024 * 1024:
            # v7x-class: 64 MiB VMEM per TC, 2 TCs share the 'parallel' grid axis
            plan_cap = 40 * 1024 * 1024
            min_steps = 4
        else:
            # v5e / v6e: 128 MiB physical VMEM
            plan_cap = 48 * 1024 * 1024
            min_steps = 2

        w_bytes = (_padded_bytes(Ho, H, compute_dtype)
                   + _padded_bytes(W, Wo, compute_dtype))

        def footprint(cb):
            in_blk = _padded_bytes(cb * H, W, x.dtype)            # double-buffered
            out_blk = _padded_bytes(cb * Ho, Wo, out_dtype)        # double-buffered
            scr = _padded_bytes(cb * Ho, W, compute_dtype)         # scratch
            mm_tmp = _padded_bytes(cb * Ho, Wo, jnp.float32)       # f32 dot result
            return 2 * in_blk + 2 * out_blk + scr + mm_tmp

        sub_in = _sublane_multiple(x.dtype)
        sub_out = _sublane_multiple(out_dtype)

        def legal(d):
            rows_in_ok = ((d * H) % sub_in == 0) or (d == nc)
            rows_out_ok = ((d * Ho) % sub_out == 0) or (d == nc)
            return rows_in_ok and rows_out_ok and (d * Ho) <= self._MAX_SLAB_ROWS

        headroom = 4 * 1024 * 1024
        block_budget = max(plan_cap - 2 * w_bytes - headroom, 2 * 1024 * 1024)
        cb = _choose_channel_block(nc, legal, footprint, block_budget, min_steps)
        grid = (nc // cb,)

        needed = footprint(cb) + 2 * w_bytes + headroom
        vmem_limit = int(min(max(needed, 16 * 1024 * 1024), (capacity * 9) // 10))

        unroll = True if cb <= 8 else 4
        kernel = _make_interp_kernel(cb, H, Ho, compute_dtype, unroll)

        itemsize_in = jnp.dtype(x.dtype).itemsize
        itemsize_out = jnp.dtype(out_dtype).itemsize
        flops = 2 * nc * Ho * W * (H + Wo)
        bytes_accessed = int(
            nc * (H * W * itemsize_in + Ho * Wo * itemsize_out)
            + (wh.size + wwt.size) * jnp.dtype(compute_dtype).itemsize
        )

        out_flat = pl.pallas_call(
            kernel,
            out_shape=jax.ShapeDtypeStruct((nc * Ho, Wo), out_dtype),
            grid_spec=pltpu.PrefetchScalarGridSpec(
                num_scalar_prefetch=0,
                grid=grid,
                in_specs=[
                    pl.BlockSpec((cb * H, W), lambda i: (i, 0)),
                    pl.BlockSpec((Ho, H), lambda i: (0, 0)),
                    pl.BlockSpec((W, Wo), lambda i: (0, 0)),
                ],
                out_specs=pl.BlockSpec((cb * Ho, Wo), lambda i: (i, 0)),
                scratch_shapes=[pltpu.VMEM((cb * Ho, W), compute_dtype)],
            ),
            compiler_params=pltpu.CompilerParams(
                dimension_semantics=("parallel",),
                vmem_limit_bytes=vmem_limit,
            ),
            cost_estimate=pl.CostEstimate(
                flops=flops, transcendentals=0, bytes_accessed=bytes_accessed
            ),
        )(x_flat, wh, wwt)

        return out_flat.reshape(N, C, Ho, Wo)


def _reference(x, scale, mode):
    """Pure-JAX reference using the same separable-matrix formulation (f32)."""
    N, C, H, W = x.shape
    Ho = int(math.floor(H * scale))
    Wo = int(math.floor(W * scale))
    wh = _interp_matrix(H, Ho, mode)
    ww = _interp_matrix(W, Wo, mode)
    return jnp.einsum("ph,nchw,qw->ncpq", wh, x.astype(jnp.float32), ww)


if __name__ == "__main__":
    key = jax.random.PRNGKey(0)
    x = jax.random.normal(key, (2, 4, 16, 16), dtype=jnp.float32)

    # f32 bilinear, scale 2 (the DLASeg upsample case)
    y = jax.block_until_ready(Interpolate(2, "bilinear")(x))
    assert y.shape == (2, 4, 32, 32), y.shape
    y_ref = _reference(x, 2, "bilinear")
    assert jnp.allclose(y, y_ref, atol=1e-5, rtol=1e-5), "bilinear f32 mismatch"

    # nearest, scale 2
    yn = jax.block_until_ready(Interpolate(2, "nearest")(x))
    yn_ref = _reference(x, 2, "nearest")
    assert jnp.allclose(yn, yn_ref, atol=1e-5, rtol=1e-5), "nearest mismatch"

    # bf16 input path (bf16 MXU operands + bf16 scratch, f32 accumulation)
    xb = x.astype(jnp.bfloat16)
    yb = jax.block_until_ready(Interpolate(2, "bilinear")(xb))
    yb_ref = _reference(xb, 2, "bilinear")
    assert jnp.allclose(
        yb.astype(jnp.float32), yb_ref, atol=5e-2, rtol=5e-2
    ), "bilinear bf16 mismatch"

    # f32 input -> bf16 output (halves HBM writeback when the graph runs bf16)
    yb2 = jax.block_until_ready(Interpolate(2, "bilinear", out_dtype=jnp.bfloat16)(x))
    assert yb2.dtype == jnp.bfloat16 and yb2.shape == (2, 4, 32, 32)
    assert jnp.allclose(
        yb2.astype(jnp.float32), y_ref, atol=5e-2, rtol=5e-2
    ), "bf16-output mismatch"

    print("KERNEL_OK")
</pallas_src>

<mosaic_0001>
module attributes {stable_mosaic.version = 11 : i64} {
  func.func @kernel(%arg0: i32, %arg1: memref<32x16xf32, #tpu.memory_space<vmem>>, %arg2: memref<32x16xf32, #tpu.memory_space<vmem>>, %arg3: memref<16x32xf32, #tpu.memory_space<vmem>>, %arg4: memref<64x32xf32, #tpu.memory_space<vmem>>, %arg5: memref<64x16xf32, #tpu.memory_space<vmem>>) attributes {dimension_semantics = [#tpu.dimension_semantics<parallel>], iteration_bounds = array<i64: 4>, scalar_prefetch = 0 : i64, scratch_operands = 1 : i64, tpu.core_type = #tpu.core_type<tc>, window_params = [{transform_indices = @transform_0, window_bounds = array<i64: 32, 16>}, {pipeline_mode = #tpu.pipeline_mode<synchronous>, transform_indices = @transform_1, window_bounds = array<i64: 32, 16>}, {pipeline_mode = #tpu.pipeline_mode<synchronous>, transform_indices = @transform_2, window_bounds = array<i64: 16, 32>}, {transform_indices = @transform_3, window_bounds = array<i64: 64, 32>}]} {
    %c0 = arith.constant 0 : index
    %c0_0 = arith.constant 0 : index
    %0 = vector.load %arg2[%c0, %c0_0] : memref<32x16xf32, #tpu.memory_space<vmem>>, vector<32x16xf32>
    %c0_i32 = arith.constant 0 : i32
    %c16_i32 = arith.constant 16 : i32
    %1 = arith.muli %c0_i32, %c16_i32 : i32
    %c32_i32 = arith.constant 32 : i32
    %2 = arith.muli %c0_i32, %c32_i32 : i32
    %3 = tpu.assume_multiple %1, 8 : i32
    %4 = tpu.assume_multiple %2, 8 : i32
    %5 = arith.index_cast %3 : i32 to index
    %c0_1 = arith.constant 0 : index
    %6 = vector.load %arg1[%5, %c0_1] : memref<32x16xf32, #tpu.memory_space<vmem>>, vector<16x16xf32>
    %cst = arith.constant dense<0.000000e+00> : vector<32x16xf32>
    %7 = tpu.matmul %0, %6, %cst {dimension_numbers = #tpu.dot_dimension_numbers<[1], [0], [0], [1], [0, 0, 1, 1], [], []>} : vector<32x16xf32>, vector<16x16xf32>, vector<32x16xf32> -> vector<32x16xf32>
    %8 = arith.index_cast %4 : i32 to index
    %c0_2 = arith.constant 0 : index
    %9 = vector.load %arg5[%8, %c0_2] : memref<64x16xf32, #tpu.memory_space<vmem>>, vector<32x16xf32>
    tpu.vector_store %arg5[%8, %c0_2], %7 {strides = array<i32>} : memref<64x16xf32, #tpu.memory_space<vmem>>, vector<32x16xf32>,
    %c1_i32 = arith.constant 1 : i32
    %c16_i32_3 = arith.constant 16 : i32
    %10 = arith.muli %c1_i32, %c16_i32_3 : i32
    %c32_i32_4 = arith.constant 32 : i32
    %11 = arith.muli %c1_i32, %c32_i32_4 : i32
    %12 = tpu.assume_multiple %10, 8 : i32
    %13 = tpu.assume_multiple %11, 8 : i32
    %14 = arith.index_cast %12 : i32 to index
    %c0_5 = arith.constant 0 : index
    %15 = vector.load %arg1[%14, %c0_5] : memref<32x16xf32, #tpu.memory_space<vmem>>, vector<16x16xf32>
    %cst_6 = arith.constant dense<0.000000e+00> : vector<32x16xf32>
    %16 = tpu.matmul %0, %15, %cst_6 {dimension_numbers = #tpu.dot_dimension_numbers<[1], [0], [0], [1], [0, 0, 1, 1], [], []>} : vector<32x16xf32>, vector<16x16xf32>, vector<32x16xf32> -> vector<32x16xf32>
    %17 = arith.index_cast %13 : i32 to index
    %c0_7 = arith.constant 0 : index
    %18 = vector.load %arg5[%17, %c0_7] : memref<64x16xf32, #tpu.memory_space<vmem>>, vector<32x16xf32>
    tpu.vector_store %arg5[%17, %c0_7], %16 {strides = array<i32>} : memref<64x16xf32, #tpu.memory_space<vmem>>, vector<32x16xf32>,
    %c2_i32 = arith.constant 2 : i32
    %c0_8 = arith.constant 0 : index
    %c0_9 = arith.constant 0 : index
    %19 = vector.load %arg5[%c0_8, %c0_9] : memref<64x16xf32, #tpu.memory_space<vmem>>, vector<64x16xf32>
    %c0_10 = arith.constant 0 : index
    %c0_11 = arith.constant 0 : index
    %20 = vector.load %arg3[%c0_10, %c0_11] : memref<16x32xf32, #tpu.memory_space<vmem>>, vector<16x32xf32>
    %cst_12 = arith.constant dense<0.000000e+00> : vector<64x32xf32>
    %21 = tpu.matmul %19, %20, %cst_12 {dimension_numbers = #tpu.dot_dimension_numbers<[1], [0], [0], [1], [0, 0, 1, 1], [], []>} : vector<64x16xf32>, vector<16x32xf32>, vector<64x32xf32> -> vector<64x32xf32>
    %c0_13 = arith.constant 0 : index
    %c0_14 = arith.constant 0 : index
    %22 = vector.load %arg4[%c0_13, %c0_14] : memref<64x32xf32, #tpu.memory_space<vmem>>, vector<64x32xf32>
    tpu.vector_store %arg4[%c0_13, %c0_14], %21 {strides = array<i32>} : memref<64x32xf32, #tpu.memory_space<vmem>>, vector<64x32xf32>,
    return
  }
  func.func @transform_0(%arg0: i32) -> (i32, i32) {
    %c0_i32 = arith.constant 0 : i32
    %c0_i32_0 = arith.constant 0 : i32
    return %arg0, %c0_i32 : i32, i32
  }
  func.func @transform_1(%arg0: i32) -> (i32, i32) {
    %c0_i32 = arith.constant 0 : i32
    %c0_i32_0 = arith.constant 0 : i32
    %c0_i32_1 = arith.constant 0 : i32
    return %c0_i32, %c0_i32_0 : i32, i32
  }
  func.func @transform_2(%arg0: i32) -> (i32, i32) {
    %c0_i32 = arith.constant 0 : i32
    %c0_i32_0 = arith.constant 0 : i32
    %c0_i32_1 = arith.constant 0 : i32
    return %c0_i32, %c0_i32_0 : i32, i32
  }
  func.func @transform_3(%arg0: i32) -> (i32, i32) {
    %c0_i32 = arith.constant 0 : i32
    %c0_i32_0 = arith.constant 0 : i32
    return %arg0, %c0_i32 : i32, i32
  }
}

</mosaic_0001>

<llo_original>
// kernel: tpu_custom_call.1
$region0: #{tpu_custom_call.1}
  #allocation0 [shape = 'u32[]', space=smem, size = 0x4, offset = 0x4, fixed_abs, tag = 'smem constant byte address 0x4 - core index']
  #allocation1 [shape = 'u32[72,128]{1,0:T(1,128)}', space=vmem, size = 0x9000, scoped, tag = 'internal scratch']
  #allocation2 [shape = 'f32[64,16]{1,0:T(8,128)}', space=vmem, size = 0x8000, scoped, tag = 'scratch operand']
  %s0 = inlined_call_operand.vmem [shape: f32[128,16], index: 0, kind: input, shape index: {}]
  %s1 = inlined_call_operand.vmem [shape: f32[32,16], index: 1, kind: input, shape index: {}]
  %s2 = inlined_call_operand.vmem [shape: f32[16,32], index: 2, kind: input, shape index: {}]
  %s3 = inlined_call_operand.vmem [shape: f32[256,32], index: 3, kind: output, shape index: {}]
  %s4 = sld [smem:[#allocation0]]
  $region45: #{tpu_custom_call.1} parent=0
    _
  %s6 = ssub.s32 1, %s4
  %s7 = scalar_select 0, %s6, %s4
  loop: start=0, step=1, limit=6
  $region2: #{tpu_custom_call.1} parent=0 // loop_pre_header
    _
  $region3: #{tpu_custom_call.1} parent=0 // loop_header
    %s9 = sphi 0, %s13
    %p10 = scmp.ge.s32.totalorder %s9, 6
    %s19 = sphi 0, %s21
    %s22 = sphi 0, %s19
    %s23 = sphi 0, %s22
    %s39 = sphi 0, %s23
    %s43 = sphi 0, %s43
    %s45 = sphi 0, %s43
    %s46 = sphi 0, %s45
    %s60 = sphi 0, %s46
    %s64 = sphi 0, %s64
    %s66 = sphi 0, %s64
    %s67 = sphi 0, %s66
    %s81 = sphi 0, %s67
    %s87 = sphi 0, %s89
    %s90 = sphi 0, %s87
    %s91 = sphi 0, %s90
    %s107 = sphi 0, %s91
  $region4: #{tpu_custom_call.1} parent=0 // loop_header_branch
    %12 = sbr.rel (%p10) target = $region8
  $region5: #{tpu_custom_call.1} parent=0 // loop_body
    %s14 = ssub.s32 %s9, 1
    %s15 = ssub.s32 %s9, 2
    %s16 = sadd.s32 %s9, 1
    %s17 = ssub.s32 %s9, %s16
    %p18 = scmp.eq.s32.totalorder %s17, 0
    %s20 = sadd.s32 %s19, 1
    %s21 = scalar_select %p18, %s19, %s20
    %p24 = pneg %p18
    %p25 = scmp.eq.s32.totalorder %s9, 3
    %p26 = por %p24, %p25
    %p27 = scmp.ne.s32.totalorder %s19, %s22
    %p28 = scmp.eq.s32.totalorder %s9, 0
    %p29 = por %p27, %p28
    %p30 = scmp.ne.s32.totalorder %s19, %s22
    %p31 = scmp.eq.s32.totalorder %s14, 3
    %p32 = por %p30, %p31
    %p33 = scmp.ne.s32.totalorder %s22, %s23
    %p34 = scmp.eq.s32.totalorder %s14, 0
    %p35 = por %p33, %p34
    %p36 = scmp.ne.s32.totalorder %s22, %s23
    %p37 = scmp.eq.s32.totalorder %s15, 3
    %p38 = por %p36, %p37
    %p40 = scmp.ne.s32.totalorder %s23, %s39
    %p41 = scmp.eq.s32.totalorder %s15, 0
    %p42 = por %p40, %p41
    %s44 = sadd.s32 %s43, 1
    %p47 = scmp.eq.s32.totalorder %s9, 3
    %p48 = scmp.ne.s32.totalorder %s43, %s45
    %p49 = scmp.eq.s32.totalorder %s9, 0
    %p50 = por %p48, %p49
    %p51 = scmp.ne.s32.totalorder %s43, %s45
    %p52 = scmp.eq.s32.totalorder %s14, 3
    %p53 = por %p51, %p52
    %p54 = scmp.ne.s32.totalorder %s45, %s46
    %p55 = scmp.eq.s32.totalorder %s14, 0
    %p56 = por %p54, %p55
    %p57 = scmp.ne.s32.totalorder %s45, %s46
    %p58 = scmp.eq.s32.totalorder %s15, 3
    %p59 = por %p57, %p58
    %p61 = scmp.ne.s32.totalorder %s46, %s60
    %p62 = scmp.eq.s32.totalorder %s15, 0
    %p63 = por %p61, %p62
    %s65 = sadd.s32 %s64, 1
    %p68 = scmp.eq.s32.totalorder %s9, 3
    %p69 = scmp.ne.s32.totalorder %s64, %s66
    %p70 = scmp.eq.s32.totalorder %s9, 0
    %p71 = por %p69, %p70
    %p72 = scmp.ne.s32.totalorder %s64, %s66
    %p73 = scmp.eq.s32.totalorder %s14, 3
    %p74 = por %p72, %p73
    %p75 = scmp.ne.s32.totalorder %s66, %s67
    %p76 = scmp.eq.s32.totalorder %s14, 0
    %p77 = por %p75, %p76
    %p78 = scmp.ne.s32.totalorder %s66, %s67
    %p79 = scmp.eq.s32.totalorder %s15, 3
    %p80 = por %p78, %p79
    %p82 = scmp.ne.s32.totalorder %s67, %s81
    %p83 = scmp.eq.s32.totalorder %s15, 0
    %p84 = por %p82, %p83
    %s85 = ssub.s32 %s9, %s16
    %p86 = scmp.eq.s32.totalorder %s85, 0
    %s88 = sadd.s32 %s87, 1
    %s89 = scalar_select %p86, %s87, %s88
    %p92 = pneg %p86
    %p93 = scmp.eq.s32.totalorder %s9, 3
    %p94 = por %p92, %p93
    %p95 = scmp.ne.s32.totalorder %s87, %s90
    %p96 = scmp.eq.s32.totalorder %s9, 0
    %p97 = por %p95, %p96
    %p98 = scmp.ne.s32.totalorder %s87, %s90
    %p99 = scmp.eq.s32.totalorder %s14, 3
    %p100 = por %p98, %p99
    %p101 = scmp.ne.s32.totalorder %s90, %s91
    %p102 = scmp.eq.s32.totalorder %s14, 0
    %p103 = por %p101, %p102
    %p104 = scmp.ne.s32.totalorder %s90, %s91
    %p105 = scmp.eq.s32.totalorder %s15, 3
    %p106 = por %p104, %p105
    %p108 = scmp.ne.s32.totalorder %s91, %s107
    %p109 = scmp.eq.s32.totalorder %s15, 0
    %p110 = por %p108, %p109
    %p111 = scmp.le.s32.totalorder 1, %s9
    %p112 = scmp.lt.s32.totalorder %s9, 5
    %p113 = pnand %p111, %p112
    %p114 = pneg %p113
    // Predicated region
    $region9: #{tpu_custom_call.1} parent=5 // pred_check
      _
    $region10: #{tpu_custom_call.1} parent=5 // pred_check_branch
      %116 = sbr.rel (%p113) target = $region12
    $region11: #{tpu_custom_call.1} parent=5 // pred_region
      %s117 = ssub.s32 %s9, 1
      // Predicated region
      $region13: #{tpu_custom_call.1} parent=11 // pred_check
        %p118 = pneg %p56
      $region14: #{tpu_custom_call.1} parent=11 // pred_check_branch
        %120 = sbr.rel (%p118) target = $region16
      $region15: #{tpu_custom_call.1} parent=11 // pred_region
        _
      $region16: #{tpu_custom_call.1} parent=11 // pred_fallthru
        _
      // Predicated region
      $region17: #{tpu_custom_call.1} parent=11 // pred_check
        %p121 = pneg %p77
      $region18: #{tpu_custom_call.1} parent=11 // pred_check_branch
        %123 = sbr.rel (%p121) target = $region20
      $region19: #{tpu_custom_call.1} parent=11 // pred_region
        _
      $region20: #{tpu_custom_call.1} parent=11 // pred_fallthru
        _
    $region12: #{tpu_custom_call.1} parent=5 // pred_fallthru
      _
    %p124 = scmp.lt.s32.totalorder %s9, 4
    // Predicated region
    $region21: #{tpu_custom_call.1} parent=5 // pred_check
      %p125 = pneg %p124
    $region22: #{tpu_custom_call.1} parent=5 // pred_check_branch
      %127 = sbr.rel (%p125) target = $region24
    $region23: #{tpu_custom_call.1} parent=5 // pred_region
      // Predicated region
      $region25: #{tpu_custom_call.1} parent=23 // pred_check
        %p128 = pneg %p29
      $region26: #{tpu_custom_call.1} parent=23 // pred_check_branch
        %130 = sbr.rel (%p128) target = $region28
      $region27: #{tpu_custom_call.1} parent=23 // pred_region
        %s131 = smul.u32 4, %s9
        %p132 = scmp.lt.s32.totalorder %s131, 15
        %s133 = scalar_select %p132, %s131, 15
        %s134 = smul.addr %s133, 8
        %s135 = scalar_lea.vmem %s0, %s134
        %s136 = smul.u32 4, %s9
      $region28: #{tpu_custom_call.1} parent=23 // pred_fallthru
        _
    $region24: #{tpu_custom_call.1} parent=5 // pred_fallthru
      _
    %p137 = scmp.le.s32.totalorder 1, %s9
    %p138 = scmp.lt.s32.totalorder %s9, 5
    %p139 = pnand %p137, %p138
    %p140 = pneg %p139
    // Predicated region
    $region29: #{tpu_custom_call.1} parent=5 // pred_check
      _
    $region30: #{tpu_custom_call.1} parent=5 // pred_check_branch
      %142 = sbr.rel (%p139) target = $region32
    $region31: #{tpu_custom_call.1} parent=5 // pred_region
      %s143 = ssub.s32 %s9, 1
      %s144 = smul.u32 4, %s14
      %p145 = scmp.lt.s32.totalorder %s144, 15
      %s146 = scalar_select %p145, %s144, 15
      %s147 = smul.addr %s146, 8
      %s148 = scalar_lea.vmem %s0, %s147
      %p149 = pneg %p35
      %p150 = pneg %p32
      %p151 = pneg %p56
      %p152 = pneg %p53
      %p153 = pneg %p77
      %p154 = pneg %p74
      %p155 = pneg %p103
      %p156 = pneg %p100
      %s157 = smul.u32 8, %s14
      %p158 = scmp.lt.s32.totalorder %s157, 31
      %s159 = scalar_select %p158, %s157, 31
      %s160 = smul.addr %s159, 8
      %s161 = scalar_lea.vmem %s3, %s160
      %s162 = smul.u32 4, %s14
      %p163 = scmp.lt.s32.totalorder %s162, 15
      %s164 = scalar_select %p163, %s162, 15
      %s165 = smul.addr %s164, 8
      %s166 = scalar_lea.vmem %s0, %s165
      %s167 = smul.u32 4, %s14
      %s168 = smul.u32 8, %s14
      %p169 = scmp.lt.s32.totalorder %s168, 31
      %s170 = scalar_select %p169, %s168, 31
      %s171 = smul.addr %s170, 8
      %s172 = scalar_lea.vmem %s3, %s171
      %s173 = smul.u32 8, %s14
      %v174 = vld [vmem:[%s1] sm:$0xff]
      %v175 = vld [vmem:[%s1 + $0x8] sm:$0xff]
      %v176 = vld [vmem:[%s1 + $0x10] sm:$0xff]
      %v177 = vld [vmem:[%s1 + $0x18] sm:$0xff]
      %v178 = vld [vmem:[%s166] sm:$0xff]
      %v179 = vld [vmem:[%s166 + $0x8] sm:$0xff]
      %vm180 = vcmask 130048
      %v182 = vsel %vm180, %v174, 0
      %v185 = vsel %vm180, %v175, 0
      %v188 = vsel %vm180, %v176, 0
      %v191 = vsel %vm180, %v177, 0
      %193 = vmatpush.msra.mxu0 0.0
      %194 = vmatpush.msra.mxu0 0.0
      %195 = vmatpush.msra.mxu0 0.0
      %196 = vmatpush.msra.mxu0 0.0
      %197 = vmatpush.msra.mxu0 0.0
      %198 = vmatpush.msra.mxu0 0.0
      %199 = vmatpush.msra.mxu0 0.0
      %200 = vmatpush.msra.mxu0 0.0
      %201 = vmatpush.msra.mxu0 0.0
      %202 = vmatpush.msra.mxu0 0.0
      %203 = vmatpush.msra.mxu0 0.0
      %204 = vmatpush.msra.mxu0 0.0
      %205 = vmatpush.msra.mxu0 0.0
      %206 = vmatpush.msra.mxu0 0.0
      %207 = vmatpush.msra.mxu0 %v179
      %208 = vmatpush.msra.mxu0 %v178
      %209 = vmatmul.f32.gmra.mxu0 %v182
      %v210 = vpop.f32.mrf.mxu0
      %v211 = vadd.f32 0.0, %v210
      %212 = vmatmul.f32.gmra.mxu0 %v185
      %v213 = vpop.f32.mrf.mxu0
      %v214 = vadd.f32 0.0, %v213
      %215 = vmatmul.f32.gmra.mxu0 %v188
      %v216 = vpop.f32.mrf.mxu0
      %v217 = vadd.f32 0.0, %v216
      %218 = vmatmul.f32.gmra.mxu0 %v191
      %v219 = vpop.f32.mrf.mxu0
      %v220 = vadd.f32 0.0, %v219
      %221 = vdwg.mxu0
      %222 = vst.msk [vmem:[#allocation2] sm:$0xff] %vm180, %v211
      %223 = vst.msk [vmem:[#allocation2 + $0x8] sm:$0xff] %vm180, %v214
      %224 = vst.msk [vmem:[#allocation2 + $0x10] sm:$0xff] %vm180, %v217
      %225 = vst.msk [vmem:[#allocation2 + $0x18] sm:$0xff] %vm180, %v220
      %s226 = scalar_lea.vmem %s166, 16
      %v227 = vld [vmem:[%s226] sm:$0xff]
      %v228 = vld [vmem:[%s226 + $0x8] sm:$0xff]
      %229 = vmatpush.msra.mxu0 0.0
      %230 = vmatpush.msra.mxu0 0.0
      %231 = vmatpush.msra.mxu0 0.0
      %232 = vmatpush.msra.mxu0 0.0
      %233 = vmatpush.msra.mxu0 0.0
      %234 = vmatpush.msra.mxu0 0.0
      %235 = vmatpush.msra.mxu0 0.0
      %236 = vmatpush.msra.mxu0 0.0
      %237 = vmatpush.msra.mxu0 0.0
      %238 = vmatpush.msra.mxu0 0.0
      %239 = vmatpush.msra.mxu0 0.0
      %240 = vmatpush.msra.mxu0 0.0
      %241 = vmatpush.msra.mxu0 0.0
      %242 = vmatpush.msra.mxu0 0.0
      %243 = vmatpush.msra.mxu0 %v228
      %244 = vmatpush.msra.mxu0 %v227
      %245 = vmatmul.f32.gmra.mxu0 %v182
      %v246 = vpop.f32.mrf.mxu0
      %v247 = vadd.f32 0.0, %v246
      %248 = vmatmul.f32.gmra.mxu0 %v185
      %v249 = vpop.f32.mrf.mxu0
      %v250 = vadd.f32 0.0, %v249
      %251 = vmatmul.f32.gmra.mxu0 %v188
      %v252 = vpop.f32.mrf.mxu0
      %v253 = vadd.f32 0.0, %v252
      %254 = vmatmul.f32.gmra.mxu0 %v191
      %v255 = vpop.f32.mrf.mxu0
      %v256 = vadd.f32 0.0, %v255
      %257 = vdwg.mxu0
      %s258 = scalar_lea.vmem [#allocation2], 32
      %259 = vst.msk [vmem:[%s258] sm:$0xff] %vm180, %v247
      %260 = vst.msk [vmem:[%s258 + $0x8] sm:$0xff] %vm180, %v250
      %261 = vst.msk [vmem:[%s258 + $0x10] sm:$0xff] %vm180, %v253
      %262 = vst.msk [vmem:[%s258 + $0x18] sm:$0xff] %vm180, %v256
      %v263 = vld [vmem:[#allocation2] sm:$0xff]
      %v264 = vld [vmem:[#allocation2 + $0x8] sm:$0xff]
      %v265 = vld [vmem:[#allocation2 + $0x10] sm:$0xff]
      %v266 = vld [vmem:[#allocation2 + $0x18] sm:$0xff]
      %v267 = vld [vmem:[#allocation2 + $0x20] sm:$0xff]
      %v268 = vld [vmem:[#allocation2 + $0x28] sm:$0xff]
      %v269 = vld [vmem:[#allocation2 + $0x30] sm:$0xff]
      %v270 = vld [vmem:[#allocation2 + $0x38] sm:$0xff]
      %v271 = vld [vmem:[%s2] sm:$0xff]
      %v272 = vld [vmem:[%s2 + $0x8] sm:$0xff]
      %v274 = vsel %vm180, %v263, 0
      %v277 = vsel %vm180, %v264, 0
      %v280 = vsel %vm180, %v265, 0
      %v283 = vsel %vm180, %v266, 0
      %v286 = vsel %vm180, %v267, 0
      %v289 = vsel %vm180, %v268, 0
      %v292 = vsel %vm180, %v269, 0
      %v295 = vsel %vm180, %v270, 0
      %297 = vmatpush.msra.mxu0 0.0
      %298 = vmatpush.msra.mxu0 0.0
      %299 = vmatpush.msra.mxu0 0.0
      %300 = vmatpush.msra.mxu0 0.0
      %301 = vmatpush.msra.mxu0 0.0
      %302 = vmatpush.msra.mxu0 0.0
      %303 = vmatpush.msra.mxu0 0.0
      %304 = vmatpush.msra.mxu0 0.0
      %305 = vmatpush.msra.mxu0 0.0
      %306 = vmatpush.msra.mxu0 0.0
      %307 = vmatpush.msra.mxu0 0.0
      %308 = vmatpush.msra.mxu0 0.0
      %309 = vmatpush.msra.mxu0 0.0
      %310 = vmatpush.msra.mxu0 0.0
      %311 = vmatpush.msra.mxu0 %v272
      %312 = vmatpush.msra.mxu0 %v271
      %313 = vmatmul.f32.gmra.mxu0 %v274
      %v314 = vpop.f32.mrf.mxu0
      %v315 = vadd.f32 0.0, %v314
      %316 = vmatmul.f32.gmra.mxu0 %v277
      %v317 = vpop.f32.mrf.mxu0
      %v318 = vadd.f32 0.0, %v317
      %319 = vmatmul.f32.gmra.mxu0 %v280
      %v320 = vpop.f32.mrf.mxu0
      %v321 = vadd.f32 0.0, %v320
      %322 = vmatmul.f32.gmra.mxu0 %v283
      %v323 = vpop.f32.mrf.mxu0
      %v324 = vadd.f32 0.0, %v323
      %325 = vmatmul.f32.gmra.mxu0 %v286
      %v326 = vpop.f32.mrf.mxu0
      %v327 = vadd.f32 0.0, %v326
      %328 = vmatmul.f32.gmra.mxu0 %v289
      %v329 = vpop.f32.mrf.mxu0
      %v330 = vadd.f32 0.0, %v329
      %331 = vmatmul.f32.gmra.mxu0 %v292
      %v332 = vpop.f32.mrf.mxu0
      %v333 = vadd.f32 0.0, %v332
      %334 = vmatmul.f32.gmra.mxu0 %v295
      %v335 = vpop.f32.mrf.mxu0
      %v336 = vadd.f32 0.0, %v335
      %337 = vdwg.mxu0
      %vm338 = vcmask 261120
      %339 = vst.msk [vmem:[%s172] sm:$0xff] %vm338, %v315
      %340 = vst.msk [vmem:[%s172 + $0x8] sm:$0xff] %vm338, %v318
      %341 = vst.msk [vmem:[%s172 + $0x10] sm:$0xff] %vm338, %v321
      %342 = vst.msk [vmem:[%s172 + $0x18] sm:$0xff] %vm338, %v324
      %343 = vst.msk [vmem:[%s172 + $0x20] sm:$0xff] %vm338, %v327
      %344 = vst.msk [vmem:[%s172 + $0x28] sm:$0xff] %vm338, %v330
      %345 = vst.msk [vmem:[%s172 + $0x30] sm:$0xff] %vm338, %v333
      %346 = vst.msk [vmem:[%s172 + $0x38] sm:$0xff] %vm338, %v336
      %s347 = smul.u32 8, %s14
      %p348 = scmp.lt.s32.totalorder %s347, 31
      %s349 = scalar_select %p348, %s347, 31
      %s350 = smul.addr %s349, 8
      %s351 = scalar_lea.vmem %s3, %s350
      // Predicated region
      $region33: #{tpu_custom_call.1} parent=31 // pred_check
        %p352 = pneg %p100
      $region34: #{tpu_custom_call.1} parent=31 // pred_check_branch
        %354 = sbr.rel (%p352) target = $region36
      $region35: #{tpu_custom_call.1} parent=31 // pred_region
        %s355 = smul.u32 8, %s14
      $region36: #{tpu_custom_call.1} parent=31 // pred_fallthru
        _
    $region32: #{tpu_custom_call.1} parent=5 // pred_fallthru
      _
    %p356 = scmp.le.s32.totalorder 2, %s9
    // Predicated region
    $region37: #{tpu_custom_call.1} parent=5 // pred_check
      %p357 = pneg %p356
    $region38: #{tpu_custom_call.1} parent=5 // pred_check_branch
      %359 = sbr.rel (%p357) target = $region40
    $region39: #{tpu_custom_call.1} parent=5 // pred_region
      %s360 = ssub.s32 %s9, 2
      // Predicated region
      $region41: #{tpu_custom_call.1} parent=39 // pred_check
        %p361 = pneg %p106
      $region42: #{tpu_custom_call.1} parent=39 // pred_check_branch
        %363 = sbr.rel (%p361) target = $region44
      $region43: #{tpu_custom_call.1} parent=39 // pred_region
        %s364 = smul.u32 8, %s15
        %p365 = scmp.lt.s32.totalorder %s364, 31
        %s366 = scalar_select %p365, %s364, 31
        %s367 = smul.addr %s366, 8
        %s368 = scalar_lea.vmem %s3, %s367
      $region44: #{tpu_custom_call.1} parent=39 // pred_fallthru
        _
    $region40: #{tpu_custom_call.1} parent=5 // pred_fallthru
      _
  $region6: #{tpu_custom_call.1} parent=0 // loop_footer
    %s13 = sadd.s32 1, %s9
  $region7: #{tpu_custom_call.1} parent=0 // loop_footer_branch
    %8 = sbr.rel target = $region3
  $region8: #{tpu_custom_call.1} parent=0 // loop_exit
    _

</llo_original>
